<compile_context>
chip_gen: v7x
topology: tpu7x:2x2x1
jax: 0.10.0
libtpu: 0.0.40
codegen_flags: <defaults>
</compile_context>

<pallas_src>
import jax
import jax.numpy as jnp
from jax import lax
from jax.experimental import pallas as pl
from jax.experimental.pallas import tpu as pltpu


def _cdiv(a, b):
    return -(-a // b)


def _round_up(v, m):
    return ((v + m - 1) // m) * m


def _sublane_multiple(dtype):
    """Packed sublane count for the dtype: 8 (f32), 16 (bf16/f16), 32 (i8/fp8)."""
    bits = jnp.dtype(dtype).itemsize * 8
    return max(8, 256 // bits)


def _default_vmem_budget():
    """~3/4 of physical VMEM: ~96 MiB on 128-MiB parts (v5e/v6e), ~48 MiB on
    64-MiB-per-TC parts (v7x). Conservative fallback if the query fails."""
    cap = 64 << 20
    try:
        cap = int(getattr(pltpu.get_tpu_info(), "vmem_capacity_bytes", cap))
    except Exception:
        pass
    return int(min(cap * 3 // 4, 112 << 20))


def _is_dual_tensorcore_chip():
    """Best-effort detection of 2-TensorCore-per-chip parts (v7x)."""
    try:
        kind = jax.devices()[0].device_kind.lower()
    except Exception:
        return False
    return ("v7" in kind) or ("7x" in kind)


def _densify_factor(n, d):
    """Lane-densification group size g: view X (n, d) as (n/g, g*d) so DMA rows,
    vregs and the MXU pass are (close to) 128-lane dense.  Only used when the
    reshape is free (n divisible by g); otherwise fall back to g = 1 rather
    than paying a full HBM copy to pad the sample axis."""
    if d >= 128:
        return 1
    g = 128 // d
    if g <= 1 or n % g != 0:
        return 1
    return g


def _auto_tile_n(d_eff, itemsize, vmem_budget, sublane):
    """Sample-tile size: target ~4 MiB per input buffer (amortizes the per-step
    overhead, reaches HBM roofline), clamped so pipelined input buffers, mask
    temporaries and (possibly double-buffered) resident f32 outputs fit the
    scoped VMEM budget."""
    # 2x the f32 output blocks (the pipeline may double-buffer them) plus
    # headroom for compiler-internal scratch.
    reserve = 2 * (d_eff * d_eff * 4 + d_eff * 4) + (8 << 20)
    avail = max(vmem_budget - reserve, 0)
    # 2 pipelined input buffers + up to 2 elementwise temporaries (row mask).
    per_row = 4 * d_eff * itemsize
    max_rows = avail // per_row
    target_rows = (4 << 20) // (d_eff * itemsize)
    rows = min(max_rows, target_rows)
    if rows >= 256:
        rows = (rows // 256) * 256          # MXU-friendly contraction lengths
    rows = max(sublane, (rows // sublane) * sublane)
    return int(rows)


def _make_kernel(tile_n, n_eff, steps, needs_mask):
    def kernel(x_ref, cov_ref, sum_ref):
        p = pl.program_id(0)               # partials axis
        k = pl.program_id(1)               # sample-tile (reduction) axis

        @pl.when(k == 0)
        def _():
            cov_ref[...] = jnp.zeros_like(cov_ref)
            sum_ref[...] = jnp.zeros_like(sum_ref)

        x = x_ref[...]                     # (tile_n, d_eff), native dtype -> MXU

        if needs_mask:
            # Zero rows past the valid sample count: covers the ragged last
            # tile (garbage-padded partial block) and any redundant grid step
            # whose index_map was clamped.  Replaces the wrapper-side jnp.pad.
            row_start = (p * steps + k) * tile_n          # unclamped global row
            valid = n_eff - row_start
            rows = lax.broadcasted_iota(jnp.int32, x.shape, 0)
            x = jnp.where(rows < valid, x, jnp.zeros_like(x))

        # X_tile^T @ X_tile on the MXU with f32 accumulation.
        cov_ref[...] += lax.dot_general(
            x, x,
            dimension_numbers=(((0,), (0,)), ((), ())),
            preferred_element_type=jnp.float32,
        )
        # Column sum (XLU), accumulated in f32.
        sum_ref[...] += jnp.sum(x, axis=0, keepdims=True, dtype=jnp.float32)

    return kernel


def dagma_forward(x, *, tile_n=None, num_partials=None, vmem_budget_bytes=None,
                  core_parallel=False):
    """Pallas implementation of Dagma.forward.

    Args:
      x: (n, d) data matrix (n samples, d variables).
      core_parallel: on a 2-TensorCore chip (v7x), set True to shard the
        partials axis across the TensorCores with pltpu.CORE_PARALLEL.
    Returns:
      cov:      (d, d) = X^T @ X / n    (the value forward() returns)
      neg_mean: (1, d) = -mean(X, 0)    (the forward() side-effect state self.X)
    """
    n, d = x.shape
    dtype = x.dtype
    itemsize = jnp.dtype(dtype).itemsize
    sublane = _sublane_multiple(dtype)

    if vmem_budget_bytes is None:
        vmem_budget_bytes = _default_vmem_budget()
    if num_partials is None:
        # Extra partial reductions only pay off if the partials axis is really
        # sharded across TensorCores; on single-TC v5e/v6e they just duplicate
        # accumulator init/writeback, so default to 1 there.
        num_partials = 2 if (core_parallel and _is_dual_tensorcore_chip()) else 1

    # ---- lane densification (free row-major reshape) for d < 128 ----
    g = _densify_factor(n, d)
    d_eff = d * g
    n_eff = n // g
    y = x.reshape(n_eff, d_eff) if g > 1 else x

    # ---- static tiling decisions ----
    if tile_n is None:
        tile_n = _auto_tile_n(d_eff, itemsize, vmem_budget_bytes, sublane)
    tile_n = max(sublane, _round_up(int(tile_n), sublane))
    tile_n = min(tile_n, _round_up(n_eff, sublane))      # tiny n -> single step

    total_tiles = _cdiv(n_eff, tile_n)
    num_partials = int(max(1, min(num_partials, total_tiles)))
    steps = _cdiv(total_tiles, num_partials)

    # Ragged tail (n_eff % tile_n) and redundant steps (num_partials * steps >
    # total_tiles) are handled in-kernel by the row mask; no jnp.pad of X.
    needs_mask = (n_eff % tile_n != 0) or (num_partials * steps != total_tiles)

    if num_partials * steps == total_tiles:
        in_map = lambda p, k: (p * steps + k, 0)
    else:
        # Clamp redundant steps onto the last block so their DMA stays in
        # bounds; the kernel masks them out entirely (valid <= 0).
        last_block = total_tiles - 1
        in_map = lambda p, k: (jnp.minimum(p * steps + k, last_block), 0)

    # NOTE: for very large d_eff (2 * d_eff^2 * 4B approaching the VMEM budget,
    # i.e. d_eff ~ 3.5k on v7x / ~5k on v5e/v6e) the resident output block no
    # longer fits and a 2-D output tiling (grid over (d/td, d/td, n/tile_n),
    # ideally upper-triangular tiles only since X^T X is symmetric) would be
    # required.  Not needed for typical Dagma problem sizes.

    cost = pl.CostEstimate(
        flops=2 * n_eff * d_eff * d_eff + n_eff * d_eff,
        transcendentals=0,
        bytes_accessed=n * d * itemsize + num_partials * (d_eff * d_eff + d_eff) * 4,
    )

    kernel = _make_kernel(tile_n, n_eff, steps, needs_mask)

    # If DMA latency were still exposed after the ~4 MiB tile sizing (small d,
    # memory-bound), the input BlockSpec could be deepened with
    # pipeline_mode=pl.Buffered(3) at modest VMEM cost.
    cov_parts, sum_parts = pl.pallas_call(
        kernel,
        out_shape=(
            jax.ShapeDtypeStruct((num_partials, d_eff, d_eff), jnp.float32),
            jax.ShapeDtypeStruct((num_partials, 1, d_eff), jnp.float32),
        ),
        grid_spec=pltpu.PrefetchScalarGridSpec(
            num_scalar_prefetch=0,
            grid=(num_partials, steps),
            in_specs=[pl.BlockSpec((tile_n, d_eff), in_map)],
            out_specs=[
                # Resident accumulators: constant block index along the
                # reduction axis k.
                pl.BlockSpec((None, d_eff, d_eff), lambda p, k: (p, 0, 0)),
                pl.BlockSpec((None, 1, d_eff), lambda p, k: (p, 0, 0)),
            ],
        ),
        compiler_params=pltpu.CompilerParams(
            dimension_semantics=(
                # CORE_PARALLEL shards the partials axis across the two
                # TensorCores on v7x; opt-in since it changes codegen and is
                # pointless on single-TC chips.
                pltpu.CORE_PARALLEL if (core_parallel and num_partials > 1)
                else "parallel",
                "arbitrary",
            ),
            vmem_limit_bytes=int(vmem_budget_bytes),
        ),
        cost_estimate=cost,
    )(y)

    inv_n = 1.0 / float(n)
    cov_full = jnp.sum(cov_parts, axis=0)            # (d_eff, d_eff) f32
    colsum = jnp.sum(sum_parts, axis=0)              # (1, d_eff)     f32
    if g > 1:
        # Fold the g diagonal d x d blocks of the densified Gram matrix and the
        # g column-sum segments back to the original d variables (tiny arrays).
        eye_g = jnp.eye(g, dtype=cov_full.dtype)
        cov_full = (cov_full.reshape(g, d, g, d)
                    * eye_g[:, None, :, None]).sum(axis=(0, 2))
        colsum = jnp.sum(colsum.reshape(g, d), axis=0, keepdims=True)

    cov = (cov_full * inv_n).astype(dtype)
    neg_mean = (-colsum * inv_n).astype(dtype)
    return cov, neg_mean


if __name__ == "__main__":
    def check(X, n, d, **kw):
        cov, neg_mean = dagma_forward(X, **kw)
        jax.block_until_ready((cov, neg_mean))
        Xf = X.astype(jnp.float32)
        cov_ref = (jnp.dot(Xf.T, Xf) / float(n)).astype(X.dtype)
        neg_mean_ref = (-jnp.mean(Xf, axis=0, keepdims=True)).astype(X.dtype)
        assert cov.shape == (d, d) and neg_mean.shape == (1, d)
        assert jnp.allclose(cov, cov_ref, atol=1e-3, rtol=1e-3), "cov mismatch"
        assert jnp.allclose(neg_mean, neg_mean_ref, atol=1e-5, rtol=1e-5), "mean mismatch"

    # Case 1: the module's toy size (dims = (d, n) -> X is (n, d)).
    # d=32 < 128 and n % (128//d) == 0 -> lane-densified (g=4), single-step.
    d1, n1 = 32, 128
    X1 = jax.random.normal(jax.random.PRNGKey(0), (n1, d1), dtype=jnp.float32)
    check(X1, n1, d1)

    # Case 2: densified (g=4) with a ragged tail (n_eff=25 vs 32-row tile):
    # exercises the in-kernel row mask (no jnp.pad).
    d2, n2 = 32, 100
    X2 = jax.random.normal(jax.random.PRNGKey(1), (n2, d2), dtype=jnp.float32)
    check(X2, n2, d2, tile_n=32)

    # Case 3: odd n defeats the free densifying reshape -> native (n, d) layout,
    # multi-tile reduction, two partials, ragged last tile.
    d3, n3 = 48, 201
    X3 = jax.random.normal(jax.random.PRNGKey(2), (n3, d3), dtype=jnp.float32)
    check(X3, n3, d3, tile_n=64, num_partials=2)

    # Case 4: densified (g=2), two partials with a redundant grid step
    # (total_tiles=3, steps=2): exercises the clamped index_map + full masking.
    d4, n4 = 64, 240
    X4 = jax.random.normal(jax.random.PRNGKey(3), (n4, d4), dtype=jnp.float32)
    check(X4, n4, d4, tile_n=48, num_partials=2)

    # TODO(synk): the training-time helpers (_score/_h/_func/minimize) use
    # slogdet / matrix inverse / an Adam loop; they are not part of forward()
    # and have no clean single-kernel Pallas equivalent, so they are omitted.
    print("KERNEL_OK")
</pallas_src>

<mosaic_0001>
module attributes {stable_mosaic.version = 11 : i64} {
  func.func @kernel(%arg0: i32, %arg1: i32, %arg2: memref<32x128xf32, #tpu.memory_space<vmem>>, %arg3: memref<1x128x128xf32, #tpu.memory_space<vmem>>, %arg4: memref<1x1x128xf32, #tpu.memory_space<vmem>>) attributes {dimension_semantics = [#tpu.dimension_semantics<parallel>, #tpu.dimension_semantics<arbitrary>], iteration_bounds = array<i64: 1, 1>, scalar_prefetch = 0 : i64, scratch_operands = 0 : i64, tpu.core_type = #tpu.core_type<tc>, window_params = [{transform_indices = @transform_0, window_bounds = array<i64: 32, 128>}, {transform_indices = @transform_1, window_bounds = array<i64: 1, 128, 128>}, {transform_indices = @transform_2, window_bounds = array<i64: 1, 1, 128>}]} {
    %c0_i32 = arith.constant 0 : i32
    %0 = arith.cmpi eq, %arg1, %c0_i32 : i32
    %1 = arith.extui %0 : i1 to i32
    %c0_i32_0 = arith.constant 0 : i32
    %2 = arith.cmpi ne, %1, %c0_i32_0 : i32
    scf.if %2 {
      %cst_15 = arith.constant 0.000000e+00 : f32
      %19 = vector.broadcast %cst_15 : f32 to vector<128x128xf32>
      %c0_16 = arith.constant 0 : index
      %c0_17 = arith.constant 0 : index
      %c0_18 = arith.constant 0 : index
      %20 = vector.load %arg3[%c0_16, %c0_17, %c0_18] : memref<1x128x128xf32, #tpu.memory_space<vmem>>, vector<1x128x128xf32>
      %21 = vector.shape_cast %20 : vector<1x128x128xf32> to vector<128x128xf32>
      %22 = vector.shape_cast %19 : vector<128x128xf32> to vector<1x128x128xf32>
      tpu.vector_store %arg3[%c0_16, %c0_17, %c0_18], %22 {strides = array<i32>} : memref<1x128x128xf32, #tpu.memory_space<vmem>>, vector<1x128x128xf32>,
      %cst_19 = arith.constant 0.000000e+00 : f32
      %23 = vector.broadcast %cst_19 : f32 to vector<1x128xf32>
      %c0_20 = arith.constant 0 : index
      %c0_21 = arith.constant 0 : index
      %c0_22 = arith.constant 0 : index
      %24 = vector.load %arg4[%c0_20, %c0_21, %c0_22] : memref<1x1x128xf32, #tpu.memory_space<vmem>>, vector<1x1x128xf32>
      %25 = vector.shape_cast %24 : vector<1x1x128xf32> to vector<1x128xf32>
      %26 = vector.shape_cast %23 : vector<1x128xf32> to vector<1x1x128xf32>
      tpu.vector_store %arg4[%c0_20, %c0_21, %c0_22], %26 {strides = array<i32>} : memref<1x1x128xf32, #tpu.memory_space<vmem>>, vector<1x1x128xf32>,
    } else {
    }
    %c0 = arith.constant 0 : index
    %c0_1 = arith.constant 0 : index
    %3 = vector.load %arg2[%c0, %c0_1] : memref<32x128xf32, #tpu.memory_space<vmem>>, vector<32x128xf32>
    %c0_2 = arith.constant 0 : index
    %c0_3 = arith.constant 0 : index
    %c0_4 = arith.constant 0 : index
    %4 = vector.load %arg3[%c0_2, %c0_3, %c0_4] : memref<1x128x128xf32, #tpu.memory_space<vmem>>, vector<1x128x128xf32>
    %5 = vector.shape_cast %4 : vector<1x128x128xf32> to vector<128x128xf32>
    %cst = arith.constant dense<0.000000e+00> : vector<128x128xf32>
    %6 = tpu.matmul %3, %3, %cst {dimension_numbers = #tpu.dot_dimension_numbers<[0], [0], [1], [1], [0, 1, 1, 1], [], []>} : vector<32x128xf32>, vector<32x128xf32>, vector<128x128xf32> -> vector<128x128xf32>
    %7 = arith.addf %5, %6 : vector<128x128xf32>
    %c0_5 = arith.constant 0 : index
    %c0_6 = arith.constant 0 : index
    %c0_7 = arith.constant 0 : index
    %8 = vector.load %arg3[%c0_5, %c0_6, %c0_7] : memref<1x128x128xf32, #tpu.memory_space<vmem>>, vector<1x128x128xf32>
    %9 = vector.shape_cast %8 : vector<1x128x128xf32> to vector<128x128xf32>
    %10 = vector.shape_cast %7 : vector<128x128xf32> to vector<1x128x128xf32>
    tpu.vector_store %arg3[%c0_5, %c0_6, %c0_7], %10 {strides = array<i32>} : memref<1x128x128xf32, #tpu.memory_space<vmem>>, vector<1x128x128xf32>,
    %c0_8 = arith.constant 0 : index
    %c0_9 = arith.constant 0 : index
    %c0_10 = arith.constant 0 : index
    %11 = vector.load %arg4[%c0_8, %c0_9, %c0_10] : memref<1x1x128xf32, #tpu.memory_space<vmem>>, vector<1x1x128xf32>
    %12 = vector.shape_cast %11 : vector<1x1x128xf32> to vector<1x128xf32>
    %cst_11 = arith.constant dense<0.000000e+00> : vector<128xf32>
    %13 = vector.multi_reduction <add>, %3, %cst_11 [0] : vector<32x128xf32> to vector<128xf32>
    %14 = vector.shape_cast %13 : vector<128xf32> to vector<1x128xf32>
    %15 = arith.addf %12, %14 : vector<1x128xf32>
    %c0_12 = arith.constant 0 : index
    %c0_13 = arith.constant 0 : index
    %c0_14 = arith.constant 0 : index
    %16 = vector.load %arg4[%c0_12, %c0_13, %c0_14] : memref<1x1x128xf32, #tpu.memory_space<vmem>>, vector<1x1x128xf32>
    %17 = vector.shape_cast %16 : vector<1x1x128xf32> to vector<1x128xf32>
    %18 = vector.shape_cast %15 : vector<1x128xf32> to vector<1x1x128xf32>
    tpu.vector_store %arg4[%c0_12, %c0_13, %c0_14], %18 {strides = array<i32>} : memref<1x1x128xf32, #tpu.memory_space<vmem>>, vector<1x1x128xf32>,
    return
  }
  func.func @transform_0(%arg0: i32, %arg1: i32) -> (i32, i32) {
    %c1_i32 = arith.constant 1 : i32
    %0 = arith.muli %arg0, %c1_i32 : i32
    %1 = arith.addi %0, %arg1 : i32
    %c0_i32 = arith.constant 0 : i32
    %c0_i32_0 = arith.constant 0 : i32
    return %1, %c0_i32 : i32, i32
  }
  func.func @transform_1(%arg0: i32, %arg1: i32) -> (i32, i32, i32) {
    %c0_i32 = arith.constant 0 : i32
    %c0_i32_0 = arith.constant 0 : i32
    %c0_i32_1 = arith.constant 0 : i32
    return %arg0, %c0_i32, %c0_i32_0 : i32, i32, i32
  }
  func.func @transform_2(%arg0: i32, %arg1: i32) -> (i32, i32, i32) {
    %c0_i32 = arith.constant 0 : i32
    %c0_i32_0 = arith.constant 0 : i32
    %c0_i32_1 = arith.constant 0 : i32
    return %arg0, %c0_i32, %c0_i32_0 : i32, i32, i32
  }
}

</mosaic_0001>

<llo_original>
// kernel: tpu_custom_call.1
$region0: #{tpu_custom_call.1}
  #allocation0 [shape = 'u32[]', space=smem, size = 0x4, offset = 0x4, fixed_abs, tag = 'smem constant byte address 0x4 - core index']
  #allocation1 [shape = 'u32[144,128]{1,0:T(1,128)}', space=vmem, size = 0x12000, scoped, tag = 'internal scratch']
  %s0 = inlined_call_operand.hbm [shape: f32[32,128], index: 0, kind: input, shape index: {}]
  %s1 = inlined_call_operand.hbm [shape: f32[1,128,128], index: 1, kind: output, shape index: {0}]
  %s2 = inlined_call_operand.hbm [shape: f32[1,1,128], index: 2, kind: output, shape index: {1}]
  %3 = xla_tuple %s1, %s2
  %s4 = sld [smem:[#allocation0]]
  $region30: #{tpu_custom_call.1} parent=0
    _
  %s6 = ssub.s32 1, %s4
  %s7 = scalar_select 0, %s6, %s4
  $region1: #{tpu_custom_call.1} parent=0
    #allocation2 [shape = 'u8[16384]{0}', space=vmem, size = 0x4000, scoped, tag = 'input window, operand 0, single buffered']
    #allocation3 [shape = 's32[1]{0}', space=sflag, size = 0x4, scoped, tag = 'scoped memory for tpu_custom_call.1']
    #allocation4 [shape = 's32[1]{0}', space=sflag, size = 0x4, scoped, tag = 'scoped memory for tpu_custom_call.1']
    #allocation5 [shape = 'u8[65536]{0}', space=vmem, size = 0x10000, scoped, tag = 'output window, operand 0, single buffered']
    #allocation6 [shape = 'u8[512]{0}', space=vmem, size = 0x400, scoped, tag = 'output window, operand 1, single buffered']
    #allocation7 [shape = 's32[1]{0}', space=sflag, size = 0x4, scoped, tag = 'scoped memory for tpu_custom_call.1']
    %8 = vsyncpa [#allocation3], 0
    %9 = vsyncpa [#allocation4], 0
    %10 = vsyncpa [#allocation7], 0
    // Predicated region
    $region2: #{tpu_custom_call.1} parent=1 // pred_check
      _
    $region3: #{tpu_custom_call.1} parent=1 // pred_check_branch
      %12 = sbr.rel (0) target = $region5
    $region4: #{tpu_custom_call.1} parent=1 // pred_region
      %s13 = sadd.s32 0, 0
      %s14 = smul.u32 4, %s13
      %s16 = ssub.s32 512, 512
      %17 = vsyncadd [#allocation3], %s16
      %s18 = smul.addr %s14, 128
      %s19 = scalar_lea.hbm %s0, %s18
      %s20 = sshll.u32 [#allocation2], 4
      %s21 = int_to_ptr.vmem [resolvable:$true] %s20
      %26 = dma.hbm_to_vmem [thread:$0]  %s19, 512, %s21, [#allocation3], 128, 128, 8
    $region5: #{tpu_custom_call.1} parent=1 // pred_fallthru
      _
    // Predicated region
    $region6: #{tpu_custom_call.1} parent=1 // pred_check
      _
    $region7: #{tpu_custom_call.1} parent=1 // pred_check_branch
      %28 = sbr.rel (0) target = $region9
    $region8: #{tpu_custom_call.1} parent=1 // pred_region
      %29 = dma.done [#allocation3], 512
    $region9: #{tpu_custom_call.1} parent=1 // pred_fallthru
      _
    %s30 = sadd.s32 0, 0
    %s31 = smul.u32 4, %s30
    %p32 = scmp.eq.s32.totalorder 0, 0
    // Predicated region
    $region10: #{tpu_custom_call.1} parent=1 // pred_check
      %p33 = pneg %p32
    $region11: #{tpu_custom_call.1} parent=1 // pred_check_branch
      %35 = sbr.rel (%p33) target = $region13
    $region12: #{tpu_custom_call.1} parent=1 // pred_region
      %36 = vst [vmem:[#allocation5] sm:$0xff] 0.0
      %37 = vst [vmem:[#allocation5 + $0x8] sm:$0xff] 0.0
      %38 = vst [vmem:[#allocation5 + $0x10] sm:$0xff] 0.0
      %39 = vst [vmem:[#allocation5 + $0x18] sm:$0xff] 0.0
      %40 = vst [vmem:[#allocation5 + $0x20] sm:$0xff] 0.0
      %41 = vst [vmem:[#allocation5 + $0x28] sm:$0xff] 0.0
      %42 = vst [vmem:[#allocation5 + $0x30] sm:$0xff] 0.0
      %43 = vst [vmem:[#allocation5 + $0x38] sm:$0xff] 0.0
      %44 = vst [vmem:[#allocation5 + $0x40] sm:$0xff] 0.0
      %45 = vst [vmem:[#allocation5 + $0x48] sm:$0xff] 0.0
      %46 = vst [vmem:[#allocation5 + $0x50] sm:$0xff] 0.0
      %47 = vst [vmem:[#allocation5 + $0x58] sm:$0xff] 0.0
      %48 = vst [vmem:[#allocation5 + $0x60] sm:$0xff] 0.0
      %49 = vst [vmem:[#allocation5 + $0x68] sm:$0xff] 0.0
      %50 = vst [vmem:[#allocation5 + $0x70] sm:$0xff] 0.0
      %51 = vst [vmem:[#allocation5 + $0x78] sm:$0xff] 0.0
      %52 = vst [vmem:[#allocation6] sm:$0x1] 0.0
    $region13: #{tpu_custom_call.1} parent=1 // pred_fallthru
      _
    %v53 = vld [vmem:[#allocation2] sm:$0xff]
    %v54 = vld [vmem:[#allocation2 + $0x8] sm:$0xff]
    %v55 = vld [vmem:[#allocation2 + $0x10] sm:$0xff]
    %v56 = vld [vmem:[#allocation2 + $0x18] sm:$0xff]
    %v57 = vld [vmem:[#allocation5] sm:$0xff]
    %v58 = vld [vmem:[#allocation5 + $0x8] sm:$0xff]
    %v59 = vld [vmem:[#allocation5 + $0x10] sm:$0xff]
    %v60 = vld [vmem:[#allocation5 + $0x18] sm:$0xff]
    %v61 = vld [vmem:[#allocation5 + $0x20] sm:$0xff]
    %v62 = vld [vmem:[#allocation5 + $0x28] sm:$0xff]
    %v63 = vld [vmem:[#allocation5 + $0x30] sm:$0xff]
    %v64 = vld [vmem:[#allocation5 + $0x38] sm:$0xff]
    %v65 = vld [vmem:[#allocation5 + $0x40] sm:$0xff]
    %v66 = vld [vmem:[#allocation5 + $0x48] sm:$0xff]
    %v67 = vld [vmem:[#allocation5 + $0x50] sm:$0xff]
    %v68 = vld [vmem:[#allocation5 + $0x58] sm:$0xff]
    %v69 = vld [vmem:[#allocation5 + $0x60] sm:$0xff]
    %v70 = vld [vmem:[#allocation5 + $0x68] sm:$0xff]
    %v71 = vld [vmem:[#allocation5 + $0x70] sm:$0xff]
    %v72 = vld [vmem:[#allocation5 + $0x78] sm:$0xff]
    %73 = vxpose.xlu0.b32.start [1/16] %v53, 128
    %74 = vxpose.xlu0.b32.cont [2/16] %v54, 128
    %75 = vxpose.xlu0.b32.cont [3/16] %v55, 128
    %76 = vxpose.xlu0.b32.cont [4/16] %v56, 128
    %77 = vxpose.xlu0.b32.cont [5/16] 0.0, 128
    %78 = vxpose.xlu0.b32.cont [6/16] 0.0, 128
    %79 = vxpose.xlu0.b32.cont [7/16] 0.0, 128
    %80 = vxpose.xlu0.b32.cont [8/16] 0.0, 128
    %81 = vxpose.xlu0.b32.cont [9/16] 0.0, 128
    %82 = vxpose.xlu0.b32.cont [10/16] 0.0, 128
    %83 = vxpose.xlu0.b32.cont [11/16] 0.0, 128
    %84 = vxpose.xlu0.b32.cont [12/16] 0.0, 128
    %85 = vxpose.xlu0.b32.cont [13/16] 0.0, 128
    %86 = vxpose.xlu0.b32.cont [14/16] 0.0, 128
    %87 = vxpose.xlu0.b32.cont [15/16] 0.0, 128
    %88 = vxpose.xlu0.b32.end [16/16] 0.0, 128
    %v89 = vpop.trf.xlu0
    %v90 = vpop.trf.xlu0
    %v91 = vpop.trf.xlu0
    %v92 = vpop.trf.xlu0
    %v93 = vpop.trf.xlu0
    %v94 = vpop.trf.xlu0
    %v95 = vpop.trf.xlu0
    %v96 = vpop.trf.xlu0
    %v97 = vpop.trf.xlu0
    %v98 = vpop.trf.xlu0
    %v99 = vpop.trf.xlu0
    %v100 = vpop.trf.xlu0
    %v101 = vpop.trf.xlu0
    %v102 = vpop.trf.xlu0
    %v103 = vpop.trf.xlu0
    %v104 = vpop.trf.xlu0
    %vm105 = vcmask 261120
    %v107 = vsel %vm105, %v89, 0
    %v110 = vsel %vm105, %v90, 0
    %v113 = vsel %vm105, %v91, 0
    %v116 = vsel %vm105, %v92, 0
    %v119 = vsel %vm105, %v93, 0
    %v122 = vsel %vm105, %v94, 0
    %v125 = vsel %vm105, %v95, 0
    %v128 = vsel %vm105, %v96, 0
    %v131 = vsel %vm105, %v97, 0
    %v134 = vsel %vm105, %v98, 0
    %v137 = vsel %vm105, %v99, 0
    %v140 = vsel %vm105, %v100, 0
    %v143 = vsel %vm105, %v101, 0
    %v146 = vsel %vm105, %v102, 0
    %v149 = vsel %vm105, %v103, 0
    %v152 = vsel %vm105, %v104, 0
    %154 = vmatprep.subr.mxu0 0.0
    %155 = vmatpush1.msra.mxu0 %v53
    %156 = vmatprep.subr.mxu0 0.0
    %157 = vmatpush1.msra.mxu0 %v54
    %158 = vmatprep.subr.mxu0 0.0
    %159 = vmatpush1.msra.mxu0 %v55
    %160 = vmatprep.subr.mxu0 0.0
    %161 = vmatpush1.msra.mxu0 %v56
    %162 = vmatprep.subr.mxu0 0.0
    %163 = vmatpush1.msra.mxu0 0.0
    %164 = vmatprep.subr.mxu0 0.0
    %165 = vmatpush1.msra.mxu0 0.0
    %166 = vmatprep.subr.mxu0 0.0
    %167 = vmatpush1.msra.mxu0 0.0
    %168 = vmatprep.subr.mxu0 0.0
    %169 = vmatpush1.msra.mxu0 0.0
    %170 = vmatprep.subr.mxu0 0.0
    %171 = vmatpush1.msra.mxu0 0.0
    %172 = vmatprep.subr.mxu0 0.0
    %173 = vmatpush1.msra.mxu0 0.0
    %174 = vmatprep.subr.mxu0 0.0
    %175 = vmatpush1.msra.mxu0 0.0
    %176 = vmatprep.subr.mxu0 0.0
    %177 = vmatpush1.msra.mxu0 0.0
    %178 = vmatprep.subr.mxu0 0.0
    %179 = vmatpush1.msra.mxu0 0.0
    %180 = vmatprep.subr.mxu0 0.0
    %181 = vmatpush1.msra.mxu0 0.0
    %182 = vmatprep.subr.mxu0 0.0
    %183 = vmatpush1.msra.mxu0 0.0
    %184 = vmatprep.subr.mxu0 0.0
    %185 = vmatpush1.msra.mxu0 0.0
    %186 = vmatprep.subr.mxu0 0.0
    %187 = vmatpush1.msra.mxu0 0.0
    %188 = vmatprep.subr.mxu0 0.0
    %189 = vmatpush1.msra.mxu0 0.0
    %190 = vmatprep.subr.mxu0 0.0
    %191 = vmatpush1.msra.mxu0 0.0
    %192 = vmatprep.subr.mxu0 0.0
    %193 = vmatpush1.msra.mxu0 0.0
    %194 = vmatprep.subr.mxu0 0.0
    %195 = vmatpush1.msra.mxu0 0.0
    %196 = vmatprep.subr.mxu0 0.0
    %197 = vmatpush1.msra.mxu0 0.0
    %198 = vmatprep.subr.mxu0 0.0
    %199 = vmatpush1.msra.mxu0 0.0
    %200 = vmatprep.subr.mxu0 0.0
    %201 = vmatpush1.msra.mxu0 0.0
    %202 = vmatprep.subr.mxu0 0.0
    %203 = vmatpush1.msra.mxu0 0.0
    %204 = vmatprep.subr.mxu0 0.0
    %205 = vmatpush1.msra.mxu0 0.0
    %206 = vmatprep.subr.mxu0 0.0
    %207 = vmatpush1.msra.mxu0 0.0
    %208 = vmatprep.subr.mxu0 0.0
    %209 = vmatpush1.msra.mxu0 0.0
    %210 = vmatprep.subr.mxu0 0.0
    %211 = vmatpush1.msra.mxu0 0.0
    %212 = vmatprep.subr.mxu0 0.0
    %213 = vmatpush1.msra.mxu0 0.0
    %214 = vmatprep.subr.mxu0 0.0
    %215 = vmatpush1.msra.mxu0 0.0
    %216 = vmatprep.subr.mxu0 0.0
    %217 = vmatpush1.msra.mxu0 0.0
    %218 = vmatprep.mubr.f32.mxu0 0.0
    %219 = vmatmul.mubr.f32.gmra.mrb[0].mxu0 %v107
    %v220 = vpop.f32.mrb[0].mxu0
    %v221 = vadd.f32 0.0, %v220
    %v222 = vpop.f32.mrb[0].mxu0
    %223 = vmatprep.mubr.f32.mxu0 0.0
    %224 = vmatmul.mubr.f32.gmra.mrb[0].mxu0 %v110
    %v225 = vpop.f32.mrb[0].mxu0
    %v226 = vadd.f32 0.0, %v225
    %v227 = vpop.f32.mrb[0].mxu0
    %228 = vmatprep.mubr.f32.mxu0 0.0
    %229 = vmatmul.mubr.f32.gmra.mrb[0].mxu0 %v113
    %v230 = vpop.f32.mrb[0].mxu0
    %v231 = vadd.f32 0.0, %v230
    %v232 = vpop.f32.mrb[0].mxu0
    %233 = vmatprep.mubr.f32.mxu0 0.0
    %234 = vmatmul.mubr.f32.gmra.mrb[0].mxu0 %v116
    %v235 = vpop.f32.mrb[0].mxu0
    %v236 = vadd.f32 0.0, %v235
    %v237 = vpop.f32.mrb[0].mxu0
    %238 = vmatprep.mubr.f32.mxu0 0.0
    %239 = vmatmul.mubr.f32.gmra.mrb[0].mxu0 %v119
    %v240 = vpop.f32.mrb[0].mxu0
    %v241 = vadd.f32 0.0, %v240
    %v242 = vpop.f32.mrb[0].mxu0
    %243 = vmatprep.mubr.f32.mxu0 0.0
    %244 = vmatmul.mubr.f32.gmra.mrb[0].mxu0 %v122
    %v245 = vpop.f32.mrb[0].mxu0
    %v246 = vadd.f32 0.0, %v245
    %v247 = vpop.f32.mrb[0].mxu0
    %248 = vmatprep.mubr.f32.mxu0 0.0
    %249 = vmatmul.mubr.f32.gmra.mrb[0].mxu0 %v125
    %v250 = vpop.f32.mrb[0].mxu0
    %v251 = vadd.f32 0.0, %v250
    %v252 = vpop.f32.mrb[0].mxu0
    %253 = vmatprep.mubr.f32.mxu0 0.0
    %254 = vmatmul.mubr.f32.gmra.mrb[0].mxu0 %v128
    %v255 = vpop.f32.mrb[0].mxu0
    %v256 = vadd.f32 0.0, %v255
    %v257 = vpop.f32.mrb[0].mxu0
    %258 = vmatprep.mubr.f32.mxu0 0.0
    %259 = vmatmul.mubr.f32.gmra.mrb[0].mxu0 %v131
    %v260 = vpop.f32.mrb[0].mxu0
    %v261 = vadd.f32 0.0, %v260
    %v262 = vpop.f32.mrb[0].mxu0
    %263 = vmatprep.mubr.f32.mxu0 0.0
    %264 = vmatmul.mubr.f32.gmra.mrb[0].mxu0 %v134
    %v265 = vpop.f32.mrb[0].mxu0
    %v266 = vadd.f32 0.0, %v265
    %v267 = vpop.f32.mrb[0].mxu0
    %268 = vmatprep.mubr.f32.mxu0 0.0
    %269 = vmatmul.mubr.f32.gmra.mrb[0].mxu0 %v137
    %v270 = vpop.f32.mrb[0].mxu0
    %v271 = vadd.f32 0.0, %v270
    %v272 = vpop.f32.mrb[0].mxu0
    %273 = vmatprep.mubr.f32.mxu0 0.0
    %274 = vmatmul.mubr.f32.gmra.mrb[0].mxu0 %v140
    %v275 = vpop.f32.mrb[0].mxu0
    %v276 = vadd.f32 0.0, %v275
    %v277 = vpop.f32.mrb[0].mxu0
    %278 = vmatprep.mubr.f32.mxu0 0.0
    %279 = vmatmul.mubr.f32.gmra.mrb[0].mxu0 %v143
    %v280 = vpop.f32.mrb[0].mxu0
    %v281 = vadd.f32 0.0, %v280
    %v282 = vpop.f32.mrb[0].mxu0
    %283 = vmatprep.mubr.f32.mxu0 0.0
    %284 = vmatmul.mubr.f32.gmra.mrb[0].mxu0 %v146
    %v285 = vpop.f32.mrb[0].mxu0
    %v286 = vadd.f32 0.0, %v285
    %v287 = vpop.f32.mrb[0].mxu0
    %288 = vmatprep.mubr.f32.mxu0 0.0
    %289 = vmatmul.mubr.f32.gmra.mrb[0].mxu0 %v149
    %v290 = vpop.f32.mrb[0].mxu0
    %v291 = vadd.f32 0.0, %v290
    %v292 = vpop.f32.mrb[0].mxu0
    %293 = vmatprep.mubr.f32.mxu0 0.0
    %294 = vmatmul.mubr.f32.gmra.mrb[0].mxu0 %v152
    %v295 = vpop.f32.mrb[0].mxu0
    %v296 = vadd.f32 0.0, %v295
    %v297 = vpop.f32.mrb[0].mxu0
    %298 = vdwg.mxu0
    %v299 = vadd.f32 %v57, %v221
    %v300 = vadd.f32 %v58, %v226
    %v301 = vadd.f32 %v59, %v231
    %v302 = vadd.f32 %v60, %v236
    %v303 = vadd.f32 %v61, %v241
    %v304 = vadd.f32 %v62, %v246
    %v305 = vadd.f32 %v63, %v251
    %v306 = vadd.f32 %v64, %v256
    %v307 = vadd.f32 %v65, %v261
    %v308 = vadd.f32 %v66, %v266
    %v309 = vadd.f32 %v67, %v271
    %v310 = vadd.f32 %v68, %v276
    %v311 = vadd.f32 %v69, %v281
    %v312 = vadd.f32 %v70, %v286
    %v313 = vadd.f32 %v71, %v291
    %v314 = vadd.f32 %v72, %v296
    %315 = vst [vmem:[#allocation5] sm:$0xff] %v299
    %316 = vst [vmem:[#allocation5 + $0x8] sm:$0xff] %v300
    %317 = vst [vmem:[#allocation5 + $0x10] sm:$0xff] %v301
    %318 = vst [vmem:[#allocation5 + $0x18] sm:$0xff] %v302
    %319 = vst [vmem:[#allocation5 + $0x20] sm:$0xff] %v303
    %320 = vst [vmem:[#allocation5 + $0x28] sm:$0xff] %v304
    %321 = vst [vmem:[#allocation5 + $0x30] sm:$0xff] %v305
    %322 = vst [vmem:[#allocation5 + $0x38] sm:$0xff] %v306
    %323 = vst [vmem:[#allocation5 + $0x40] sm:$0xff] %v307
    %324 = vst [vmem:[#allocation5 + $0x48] sm:$0xff] %v308
    %325 = vst [vmem:[#allocation5 + $0x50] sm:$0xff] %v309
    %326 = vst [vmem:[#allocation5 + $0x58] sm:$0xff] %v310
    %327 = vst [vmem:[#allocation5 + $0x60] sm:$0xff] %v311
    %328 = vst [vmem:[#allocation5 + $0x68] sm:$0xff] %v312
    %329 = vst [vmem:[#allocation5 + $0x70] sm:$0xff] %v313
    %330 = vst [vmem:[#allocation5 + $0x78] sm:$0xff] %v314
    %v331 = vld [vmem:[#allocation6] sm:$0x1]
    %v332 = vadd.f32 %v53, %v54
    %v333 = vadd.f32 %v332, %v55
    %v334 = vadd.f32 %v333, %v56
    %v335 = vrot.slane %v334, 4
    %v336 = vadd.f32 %v334, %v335
    %v337 = vrot.slane %v336, 2
    %v338 = vadd.f32 %v336, %v337
    %v339 = vrot.slane %v338, 1
    %v340 = vadd.f32 %v338, %v339
    %v341 = vadd.f32 %v331, %v340
    %342 = vst [vmem:[#allocation6] sm:$0x1] %v341
    // Predicated region
    $region14: #{tpu_custom_call.1} parent=1 // pred_check
      _
    $region15: #{tpu_custom_call.1} parent=1 // pred_check_branch
      %344 = sbr.rel (0) target = $region17
    $region16: #{tpu_custom_call.1} parent=1 // pred_region
      %s346 = ssub.s32 2048, 2048
      %347 = vsyncadd [#allocation4], %s346
      %s348 = sshll.u32 [#allocation5], 4
      %s349 = int_to_ptr.vmem [resolvable:$true] %s348
      %354 = dma.vmem_to_hbm [thread:$0]  %s349, 2048, %s1, [#allocation4], 128, 128, 8
    $region17: #{tpu_custom_call.1} parent=1 // pred_fallthru
      _
    // Predicated region
    $region18: #{tpu_custom_call.1} parent=1 // pred_check
      _
    $region19: #{tpu_custom_call.1} parent=1 // pred_check_branch
      %356 = sbr.rel (0) target = $region21
    $region20: #{tpu_custom_call.1} parent=1 // pred_region
      %s358 = ssub.s32 16, 16
      %359 = vsyncadd [#allocation7], %s358
      %s361 = sshll.u32 [#allocation6], 4
      %s362 = int_to_ptr.vmem [resolvable:$true] %s361
      %364 = dma.vmem_to_hbm [thread:$0]  %s362, 16, %s2, [#allocation7]
    $region21: #{tpu_custom_call.1} parent=1 // pred_fallthru
      _
    // Predicated region
    $region22: #{tpu_custom_call.1} parent=1 // pred_check
      _
    $region23: #{tpu_custom_call.1} parent=1 // pred_check_branch
      %366 = sbr.rel (0) target = $region25
    $region24: #{tpu_custom_call.1} parent=1 // pred_region
      %367 = dma.done [#allocation4], 2048
    $region25: #{tpu_custom_call.1} parent=1 // pred_fallthru
      _
    // Predicated region
    $region26: #{tpu_custom_call.1} parent=1 // pred_check
      _
    $region27: #{tpu_custom_call.1} parent=1 // pred_check_branch
      %369 = sbr.rel (0) target = $region29
    $region28: #{tpu_custom_call.1} parent=1 // pred_region
      %370 = dma.done [#allocation7], 16
    $region29: #{tpu_custom_call.1} parent=1 // pred_fallthru
      _
    %371 = vsyncpa [#allocation3], 1
    %372 = vsyncpa [#allocation4], 1
    %373 = vsyncpa [#allocation7], 1

</llo_original>
